<compile_context>
chip_gen: v5e
topology: v5e:2x2
jax: 0.10.0
libtpu: 0.0.40
codegen_flags: <defaults>
</compile_context>

<pallas_src>
import functools

import jax
import jax.numpy as jnp
from jax.experimental import pallas as pl
from jax.experimental.pallas import tpu as pltpu

LANE = 128   # vreg lane width: feature + node dims padded to this
SUB = 8      # vreg sublane width: graph dim padded to this


def _round_up(n, m):
    return ((n + m - 1) // m) * m


def _pad2(x, rows, cols):
    return jnp.pad(x, ((0, rows - x.shape[0]), (0, cols - x.shape[1])))


def _vmem_spec():
    return pl.BlockSpec(memory_space=pltpu.MemorySpace.VMEM)


def _vmem_limit_bytes():
    """Generation-aware VMEM budget: capacity minus headroom, clamped."""
    try:
        cap = int(pltpu.get_tpu_info().vmem_capacity_bytes)
    except Exception:
        cap = 64 * 1024 * 1024
    headroom = 16 * 1024 * 1024
    return int(min(max(cap - headroom, 32 * 1024 * 1024), 120 * 1024 * 1024))


# ---------------------------------------------------------------------------
# Fused Pallas kernel: conv stack -> pool -> lin1(+relu) -> lin2
# All refs are whole-array VMEM blocks.  MXU operands are bf16, accumulation
# and biases are f32, output slab is f32 and lane/sublane dense.
# ---------------------------------------------------------------------------
def fused_gcn_kernel(a_ref, p_ref, x_ref, cw_ref, cb_ref,
                     w1_ref, b1_ref, w2_ref, b2_ref, o_ref, *, num_layers):
    a = a_ref[...]                       # [Np, Np]  bf16 normalized adjacency
    x = x_ref[...]                       # [Np, Fp]  bf16 node features

    # GCN conv stack: x = relu(A_hat @ (x @ W_l) + b_l), unrolled statically.
    # TODO(synk): switch to lax.fori_loop with dynamic cw_ref[l] if L > ~4.
    for l in range(num_layers):
        xw = jnp.dot(x, cw_ref[l], preferred_element_type=jnp.float32)
        agg = jnp.dot(a, xw.astype(jnp.bfloat16),
                      preferred_element_type=jnp.float32)
        x = jnp.maximum(agg + cb_ref[l:l + 1, :], 0.0).astype(jnp.bfloat16)

    # global_add_pool as P @ x over the already-resident feature buffer.
    pooled = jnp.dot(p_ref[...], x, preferred_element_type=jnp.float32)  # [Gp, Fp]

    # lin1 + relu
    h = jnp.maximum(
        jnp.dot(pooled.astype(jnp.bfloat16), w1_ref[...],
                preferred_element_type=jnp.float32) + b1_ref[...], 0.0)

    # F.dropout(training=False) is an identity -> nothing to compute.
    # lin2 (no activation); output slab is lane/sublane dense [Gp, Fp] f32.
    o_ref[...] = (jnp.dot(h.astype(jnp.bfloat16), w2_ref[...],
                          preferred_element_type=jnp.float32) + b2_ref[...])


# ---------------------------------------------------------------------------
# Wrapper: pad activations, call the fused kernel once, slice real logits.
# ---------------------------------------------------------------------------
def gcn_forward(prepped, x, a_hat, pool_mat):
    L = prepped["num_layers"]
    fp = prepped["fp"]
    n = a_hat.shape[0]
    g = pool_mat.shape[0]
    n_p = _round_up(n, LANE)      # node dim -> lane-dense (MXU K-dim clean)
    g_p = _round_up(g, SUB)       # graph dim -> sublane-dense output slab

    x_p = _pad2(x.astype(jnp.float32), n_p, fp).astype(jnp.bfloat16)        # [Np, Fp]
    a_p = _pad2(a_hat.astype(jnp.float32), n_p, n_p).astype(jnp.bfloat16)   # [Np, Np]
    p_p = _pad2(pool_mat.astype(jnp.float32), g_p, n_p).astype(jnp.bfloat16)  # [Gp, Np]

    args = (a_p, p_p, x_p,
            prepped["conv_w"], prepped["conv_b"],
            prepped["w1"], prepped["b1"], prepped["w2"], prepped["b2"])

    flops = 2 * (L * (n_p * fp * fp + n_p * n_p * fp)
                 + g_p * n_p * fp + 2 * g_p * fp * fp)
    bytes_accessed = (sum(int(a.size) * a.dtype.itemsize for a in args)
                      + 4 * g_p * fp)

    out_p = pl.pallas_call(
        functools.partial(fused_gcn_kernel, num_layers=L),
        out_shape=jax.ShapeDtypeStruct((g_p, fp), jnp.float32),
        in_specs=[_vmem_spec()] * len(args),
        out_specs=_vmem_spec(),
        compiler_params=pltpu.CompilerParams(
            vmem_limit_bytes=_vmem_limit_bytes()),
        cost_estimate=pl.CostEstimate(flops=flops, transcendentals=0,
                                      bytes_accessed=bytes_accessed),
    )(*args)

    return out_p[:g, :prepped["out_dim"]]


# ---------------------------------------------------------------------------
# Plain-JAX glue: normalized adjacency, pooling matrix, params, prep/padding.
# ---------------------------------------------------------------------------
def build_norm_adj(edge_index, num_nodes, edge_weight=None):
    """Dense D^-1/2 (A + I) D^-1/2 matching PyG gcn_norm: duplicate edges are
    summed, self-loops (weight 1) added only for nodes with no self-loop edge
    (index-based presence test, like add_remaining_self_loops)."""
    src, dst = edge_index[0], edge_index[1]
    if edge_weight is None:
        edge_weight = jnp.ones(src.shape[0], jnp.float32)
    a = jnp.zeros((num_nodes, num_nodes), jnp.float32)
    a = a.at[dst, src].add(edge_weight)                   # edge j -> i : A[i, j]
    loop_count = jnp.zeros((num_nodes,), jnp.float32).at[src].add(
        (src == dst).astype(jnp.float32))
    a = a + jnp.diag(jnp.where(loop_count == 0.0, 1.0, 0.0))
    deg = a.sum(axis=1)
    dinv = jnp.where(deg > 0, deg ** -0.5, 0.0)
    return a * dinv[:, None] * dinv[None, :]


def build_pool_matrix(batch, num_graphs):
    return (batch[None, :] == jnp.arange(num_graphs)[:, None]).astype(jnp.float32)


def init_gcn_params(key, input_dim, hidden_dim, output_dim, num_layers):
    params = {"convs": []}
    dims = [input_dim] + [hidden_dim] * num_layers
    for i in range(num_layers):
        key, k = jax.random.split(key)
        fan_in, fan_out = dims[i], dims[i + 1]
        limit = (6.0 / (fan_in + fan_out)) ** 0.5         # glorot (GCNConv default)
        w = jax.random.uniform(k, (fan_in, fan_out), jnp.float32, -limit, limit)
        b = jnp.zeros((fan_out,), jnp.float32)            # GCNConv bias init = zeros
        params["convs"].append((w, b))

    def linear_init(key, fan_in, fan_out):
        kw, kb = jax.random.split(key)
        lim = (1.0 / fan_in) ** 0.5                       # torch Linear default bounds
        w = jax.random.uniform(kw, (fan_in, fan_out), jnp.float32, -lim, lim)
        b = jax.random.uniform(kb, (fan_out,), jnp.float32, -lim, lim)
        return w, b

    key, k1 = jax.random.split(key)
    key, k2 = jax.random.split(key)
    params["lin1"] = linear_init(k1, hidden_dim, hidden_dim)
    params["lin2"] = linear_init(k2, hidden_dim, output_dim)
    return params


def prepare_params(params, input_dim, hidden_dim, output_dim):
    """One-time padding/stacking into lane-dense slabs. Weights bf16 (MXU
    operands), biases f32 (post-MXU add in f32)."""
    fp = _round_up(max(input_dim, hidden_dim, output_dim), LANE)
    conv_w = jnp.stack([_pad2(w, fp, fp) for (w, _) in params["convs"]]
                       ).astype(jnp.bfloat16)                               # [L, Fp, Fp]
    conv_b = jnp.stack([jnp.pad(b, (0, fp - b.shape[0]))
                        for (_, b) in params["convs"]]).astype(jnp.float32)  # [L, Fp]
    w1 = _pad2(params["lin1"][0], fp, fp).astype(jnp.bfloat16)
    b1 = jnp.pad(params["lin1"][1], (0, fp - params["lin1"][1].shape[0]))[None, :]
    w2 = _pad2(params["lin2"][0], fp, fp).astype(jnp.bfloat16)
    b2 = jnp.pad(params["lin2"][1], (0, fp - params["lin2"][1].shape[0]))[None, :]
    return dict(num_layers=len(params["convs"]), fp=fp, out_dim=output_dim,
                conv_w=conv_w, conv_b=conv_b,
                w1=w1, b1=b1.astype(jnp.float32),
                w2=w2, b2=b2.astype(jnp.float32))


def gcn_forward_ref(params, x, a_hat, pool_mat):
    """Pure-f32 plain-JAX reference (matches the PyTorch module, eval mode)."""
    for w, b in params["convs"]:
        x = jnp.maximum(a_hat @ (x @ w) + b[None, :], 0.0)
    x = pool_mat @ x
    x = jnp.maximum(x @ params["lin1"][0] + params["lin1"][1][None, :], 0.0)
    x = x @ params["lin2"][0] + params["lin2"][1][None, :]
    return x


# ---------------------------------------------------------------------------
if __name__ == "__main__":
    key = jax.random.PRNGKey(0)

    # Small synthetic batched graph: 2 graphs of 8 nodes each.
    num_nodes, num_graphs = 16, 2
    input_dim, hidden_dim, output_dim, num_layers = 8, 32, 4, 3

    key, kx, ke0, ke1 = jax.random.split(key, 4)
    x = jax.random.normal(kx, (num_nodes, input_dim), jnp.float32)
    batch = jnp.concatenate([jnp.zeros(8, jnp.int32), jnp.ones(8, jnp.int32)])

    # Random within-graph edges, symmetrized (undirected).
    e_per_graph = 12
    src0 = jax.random.randint(ke0, (e_per_graph,), 0, 8)
    dst0 = jax.random.randint(jax.random.fold_in(ke0, 1), (e_per_graph,), 0, 8)
    src1 = jax.random.randint(ke1, (e_per_graph,), 8, 16)
    dst1 = jax.random.randint(jax.random.fold_in(ke1, 1), (e_per_graph,), 8, 16)
    src = jnp.concatenate([src0, src1, dst0, dst1])
    dst = jnp.concatenate([dst0, dst1, src0, src1])
    edge_index = jnp.stack([src, dst], axis=0)

    a_hat = build_norm_adj(edge_index, num_nodes)
    pool_mat = build_pool_matrix(batch, num_graphs)

    key, kp = jax.random.split(key)
    params = init_gcn_params(kp, input_dim, hidden_dim, output_dim, num_layers)
    prepped = prepare_params(params, input_dim, hidden_dim, output_dim)

    out = gcn_forward(prepped, x, a_hat, pool_mat)
    out = jax.block_until_ready(out)

    ref = gcn_forward_ref(params, x, a_hat, pool_mat)
    assert out.shape == (num_graphs, output_dim)
    # bf16 MXU operands (f32 accumulation) -> relaxed parity tolerance.
    assert jnp.allclose(out, ref, atol=1e-1, rtol=5e-2), "mismatch vs reference"

    print("KERNEL_OK")
</pallas_src>

<mosaic_0001>
module attributes {stable_mosaic.version = 11 : i64} {
  func.func @fused_gcn_kernel(%arg0: memref<128x128xbf16, #tpu.memory_space<vmem>>, %arg1: memref<8x128xbf16, #tpu.memory_space<vmem>>, %arg2: memref<128x128xbf16, #tpu.memory_space<vmem>>, %arg3: memref<3x128x128xbf16, #tpu.memory_space<vmem>>, %arg4: memref<3x128xf32, #tpu.memory_space<vmem>>, %arg5: memref<128x128xbf16, #tpu.memory_space<vmem>>, %arg6: memref<1x128xf32, #tpu.memory_space<vmem>>, %arg7: memref<128x128xbf16, #tpu.memory_space<vmem>>, %arg8: memref<1x128xf32, #tpu.memory_space<vmem>>, %arg9: memref<8x128xf32, #tpu.memory_space<vmem>>) attributes {dimension_semantics = [], scalar_prefetch = 0 : i64, scratch_operands = 0 : i64, tpu.core_type = #tpu.core_type<tc>} {
    %c0 = arith.constant 0 : index
    %c0_0 = arith.constant 0 : index
    %0 = vector.load %arg0[%c0, %c0_0] : memref<128x128xbf16, #tpu.memory_space<vmem>>, vector<128x128xbf16>
    %c0_1 = arith.constant 0 : index
    %c0_2 = arith.constant 0 : index
    %1 = vector.load %arg2[%c0_1, %c0_2] : memref<128x128xbf16, #tpu.memory_space<vmem>>, vector<128x128xbf16>
    %c0_3 = arith.constant 0 : index
    %c0_4 = arith.constant 0 : index
    %c0_5 = arith.constant 0 : index
    %2 = vector.load %arg3[%c0_3, %c0_4, %c0_5] : memref<3x128x128xbf16, #tpu.memory_space<vmem>>, vector<1x128x128xbf16>
    %3 = vector.shape_cast %2 : vector<1x128x128xbf16> to vector<128x128xbf16>
    %cst = arith.constant dense<0.000000e+00> : vector<128x128xf32>
    %4 = tpu.matmul %1, %3, %cst {dimension_numbers = #tpu.dot_dimension_numbers<[1], [0], [0], [1], [0, 0, 1, 1], [], []>} : vector<128x128xbf16>, vector<128x128xbf16>, vector<128x128xf32> -> vector<128x128xf32>
    %5 = arith.truncf %4 : vector<128x128xf32> to vector<128x128xbf16>
    %cst_6 = arith.constant dense<0.000000e+00> : vector<128x128xf32>
    %6 = tpu.matmul %0, %5, %cst_6 {dimension_numbers = #tpu.dot_dimension_numbers<[1], [0], [0], [1], [0, 0, 1, 1], [], []>} : vector<128x128xbf16>, vector<128x128xbf16>, vector<128x128xf32> -> vector<128x128xf32>
    %c0_7 = arith.constant 0 : index
    %c0_8 = arith.constant 0 : index
    %7 = vector.load %arg4[%c0_7, %c0_8] : memref<3x128xf32, #tpu.memory_space<vmem>>, vector<1x128xf32>
    %8 = vector.broadcast %7 : vector<1x128xf32> to vector<128x128xf32>
    %9 = arith.addf %6, %8 : vector<128x128xf32>
    %cst_9 = arith.constant 0.000000e+00 : f32
    %10 = vector.broadcast %cst_9 : f32 to vector<128x128xf32>
    %11 = arith.maximumf %9, %10 : vector<128x128xf32>
    %12 = arith.truncf %11 : vector<128x128xf32> to vector<128x128xbf16>
    %c1 = arith.constant 1 : index
    %c0_10 = arith.constant 0 : index
    %c0_11 = arith.constant 0 : index
    %13 = vector.load %arg3[%c1, %c0_10, %c0_11] : memref<3x128x128xbf16, #tpu.memory_space<vmem>>, vector<1x128x128xbf16>
    %14 = vector.shape_cast %13 : vector<1x128x128xbf16> to vector<128x128xbf16>
    %cst_12 = arith.constant dense<0.000000e+00> : vector<128x128xf32>
    %15 = tpu.matmul %12, %14, %cst_12 {dimension_numbers = #tpu.dot_dimension_numbers<[1], [0], [0], [1], [0, 0, 1, 1], [], []>} : vector<128x128xbf16>, vector<128x128xbf16>, vector<128x128xf32> -> vector<128x128xf32>
    %16 = arith.truncf %15 : vector<128x128xf32> to vector<128x128xbf16>
    %cst_13 = arith.constant dense<0.000000e+00> : vector<128x128xf32>
    %17 = tpu.matmul %0, %16, %cst_13 {dimension_numbers = #tpu.dot_dimension_numbers<[1], [0], [0], [1], [0, 0, 1, 1], [], []>} : vector<128x128xbf16>, vector<128x128xbf16>, vector<128x128xf32> -> vector<128x128xf32>
    %c1_14 = arith.constant 1 : index
    %c0_15 = arith.constant 0 : index
    %18 = vector.load %arg4[%c1_14, %c0_15] : memref<3x128xf32, #tpu.memory_space<vmem>>, vector<1x128xf32>
    %19 = vector.broadcast %18 : vector<1x128xf32> to vector<128x128xf32>
    %20 = arith.addf %17, %19 : vector<128x128xf32>
    %cst_16 = arith.constant 0.000000e+00 : f32
    %21 = vector.broadcast %cst_16 : f32 to vector<128x128xf32>
    %22 = arith.maximumf %20, %21 : vector<128x128xf32>
    %23 = arith.truncf %22 : vector<128x128xf32> to vector<128x128xbf16>
    %c2 = arith.constant 2 : index
    %c0_17 = arith.constant 0 : index
    %c0_18 = arith.constant 0 : index
    %24 = vector.load %arg3[%c2, %c0_17, %c0_18] : memref<3x128x128xbf16, #tpu.memory_space<vmem>>, vector<1x128x128xbf16>
    %25 = vector.shape_cast %24 : vector<1x128x128xbf16> to vector<128x128xbf16>
    %cst_19 = arith.constant dense<0.000000e+00> : vector<128x128xf32>
    %26 = tpu.matmul %23, %25, %cst_19 {dimension_numbers = #tpu.dot_dimension_numbers<[1], [0], [0], [1], [0, 0, 1, 1], [], []>} : vector<128x128xbf16>, vector<128x128xbf16>, vector<128x128xf32> -> vector<128x128xf32>
    %27 = arith.truncf %26 : vector<128x128xf32> to vector<128x128xbf16>
    %cst_20 = arith.constant dense<0.000000e+00> : vector<128x128xf32>
    %28 = tpu.matmul %0, %27, %cst_20 {dimension_numbers = #tpu.dot_dimension_numbers<[1], [0], [0], [1], [0, 0, 1, 1], [], []>} : vector<128x128xbf16>, vector<128x128xbf16>, vector<128x128xf32> -> vector<128x128xf32>
    %c2_21 = arith.constant 2 : index
    %c0_22 = arith.constant 0 : index
    %29 = vector.load %arg4[%c2_21, %c0_22] : memref<3x128xf32, #tpu.memory_space<vmem>>, vector<1x128xf32>
    %30 = vector.broadcast %29 : vector<1x128xf32> to vector<128x128xf32>
    %31 = arith.addf %28, %30 : vector<128x128xf32>
    %cst_23 = arith.constant 0.000000e+00 : f32
    %32 = vector.broadcast %cst_23 : f32 to vector<128x128xf32>
    %33 = arith.maximumf %31, %32 : vector<128x128xf32>
    %34 = arith.truncf %33 : vector<128x128xf32> to vector<128x128xbf16>
    %c0_24 = arith.constant 0 : index
    %c0_25 = arith.constant 0 : index
    %35 = vector.load %arg1[%c0_24, %c0_25] : memref<8x128xbf16, #tpu.memory_space<vmem>>, vector<8x128xbf16>
    %cst_26 = arith.constant dense<0.000000e+00> : vector<8x128xf32>
    %36 = tpu.matmul %35, %34, %cst_26 {dimension_numbers = #tpu.dot_dimension_numbers<[1], [0], [0], [1], [0, 0, 1, 1], [], []>} : vector<8x128xbf16>, vector<128x128xbf16>, vector<8x128xf32> -> vector<8x128xf32>
    %37 = arith.truncf %36 : vector<8x128xf32> to vector<8x128xbf16>
    %c0_27 = arith.constant 0 : index
    %c0_28 = arith.constant 0 : index
    %38 = vector.load %arg5[%c0_27, %c0_28] : memref<128x128xbf16, #tpu.memory_space<vmem>>, vector<128x128xbf16>
    %cst_29 = arith.constant dense<0.000000e+00> : vector<8x128xf32>
    %39 = tpu.matmul %37, %38, %cst_29 {dimension_numbers = #tpu.dot_dimension_numbers<[1], [0], [0], [1], [0, 0, 1, 1], [], []>} : vector<8x128xbf16>, vector<128x128xbf16>, vector<8x128xf32> -> vector<8x128xf32>
    %c0_30 = arith.constant 0 : index
    %c0_31 = arith.constant 0 : index
    %40 = vector.load %arg6[%c0_30, %c0_31] : memref<1x128xf32, #tpu.memory_space<vmem>>, vector<1x128xf32>
    %41 = vector.broadcast %40 : vector<1x128xf32> to vector<8x128xf32>
    %42 = arith.addf %39, %41 : vector<8x128xf32>
    %cst_32 = arith.constant 0.000000e+00 : f32
    %43 = vector.broadcast %cst_32 : f32 to vector<8x128xf32>
    %44 = arith.maximumf %42, %43 : vector<8x128xf32>
    %45 = arith.truncf %44 : vector<8x128xf32> to vector<8x128xbf16>
    %c0_33 = arith.constant 0 : index
    %c0_34 = arith.constant 0 : index
    %46 = vector.load %arg7[%c0_33, %c0_34] : memref<128x128xbf16, #tpu.memory_space<vmem>>, vector<128x128xbf16>
    %cst_35 = arith.constant dense<0.000000e+00> : vector<8x128xf32>
    %47 = tpu.matmul %45, %46, %cst_35 {dimension_numbers = #tpu.dot_dimension_numbers<[1], [0], [0], [1], [0, 0, 1, 1], [], []>} : vector<8x128xbf16>, vector<128x128xbf16>, vector<8x128xf32> -> vector<8x128xf32>
    %c0_36 = arith.constant 0 : index
    %c0_37 = arith.constant 0 : index
    %48 = vector.load %arg8[%c0_36, %c0_37] : memref<1x128xf32, #tpu.memory_space<vmem>>, vector<1x128xf32>
    %49 = vector.broadcast %48 : vector<1x128xf32> to vector<8x128xf32>
    %50 = arith.addf %47, %49 : vector<8x128xf32>
    %c0_38 = arith.constant 0 : index
    %c0_39 = arith.constant 0 : index
    %51 = vector.load %arg9[%c0_38, %c0_39] : memref<8x128xf32, #tpu.memory_space<vmem>>, vector<8x128xf32>
    tpu.vector_store %arg9[%c0_38, %c0_39], %50 {strides = array<i32>} : memref<8x128xf32, #tpu.memory_space<vmem>>, vector<8x128xf32>,
    return
  }
}

</mosaic_0001>

<llo_original>
// kernel: tpu_custom_call.1
$region0: #{tpu_custom_call.1}
  #allocation0 [shape = 'u32[]', space=smem, size = 0x4, offset = 0x4, fixed_abs, tag = 'smem constant byte address 0x4 - core index']
  #allocation1 [shape = 'u32[72,128]{1,0:T(1,128)}', space=vmem, size = 0x9000, scoped, tag = 'internal scratch']
  %s0 = inlined_call_operand.hbm [shape: bf16[128,128], index: 0, kind: input, shape index: {}]
  %s1 = inlined_call_operand.hbm [shape: bf16[8,128], index: 1, kind: input, shape index: {}]
  %s2 = inlined_call_operand.hbm [shape: bf16[128,128], index: 2, kind: input, shape index: {}]
  %s3 = inlined_call_operand.hbm [shape: bf16[3,128,128], index: 3, kind: input, shape index: {}]
  %s4 = inlined_call_operand.hbm [shape: f32[3,128], index: 4, kind: input, shape index: {}]
  %s5 = inlined_call_operand.hbm [shape: bf16[128,128], index: 5, kind: input, shape index: {}]
  %s6 = inlined_call_operand.vmem [shape: f32[1,128], index: 6, kind: input, shape index: {}]
  %s7 = inlined_call_operand.hbm [shape: bf16[128,128], index: 7, kind: input, shape index: {}]
  %s8 = inlined_call_operand.vmem [shape: f32[1,128], index: 8, kind: input, shape index: {}]
  %s9 = inlined_call_operand.hbm [shape: f32[8,128], index: 9, kind: output, shape index: {}]
  %s10 = sld [smem:[#allocation0]]
  $region74: #{tpu_custom_call.1} parent=0
    _
  %s12 = ssub.s32 1, %s10
  %s13 = scalar_select 0, %s12, %s10
  $region1: #{tpu_custom_call.1} parent=0
    #allocation2 [shape = 'u8[32768]{0}', space=vmem, size = 0x8000, scoped, tag = 'input window, operand 0, single buffered']
    #allocation3 [shape = 's32[1]{0}', space=sflag, size = 0x4, scoped, tag = 'scoped memory for tpu_custom_call.1']
    #allocation4 [shape = 's32[1]{0}', space=sflag, size = 0x4, scoped, tag = 'scoped memory for tpu_custom_call.1']
    #allocation5 [shape = 'u8[2048]{0}', space=vmem, size = 0x800, scoped, tag = 'input window, operand 1, single buffered']
    #allocation6 [shape = 's32[1]{0}', space=sflag, size = 0x4, scoped, tag = 'scoped memory for tpu_custom_call.1']
    #allocation7 [shape = 'u8[32768]{0}', space=vmem, size = 0x8000, scoped, tag = 'input window, operand 2, single buffered']
    #allocation8 [shape = 'u8[98304]{0}', space=vmem, size = 0x18000, scoped, tag = 'input window, operand 3, single buffered']
    #allocation9 [shape = 's32[1]{0}', space=sflag, size = 0x4, scoped, tag = 'scoped memory for tpu_custom_call.1']
    #allocation10 [shape = 'u8[2048]{0}', space=vmem, size = 0x800, scoped, tag = 'input window, operand 4, single buffered']
    #allocation11 [shape = 'u8[32768]{0}', space=vmem, size = 0x8000, scoped, tag = 'input window, operand 5, single buffered']
    #allocation12 [shape = 's32[1]{0}', space=sflag, size = 0x4, scoped, tag = 'scoped memory for tpu_custom_call.1']
    #allocation13 [shape = 'u8[32768]{0}', space=vmem, size = 0x8000, scoped, tag = 'input window, operand 7, single buffered']
    #allocation14 [shape = 'u8[4096]{0}', space=vmem, size = 0x1000, scoped, tag = 'output window, operand 0, single buffered']
    %14 = vsyncpa [#allocation3], 0
    %15 = vsyncpa [#allocation6], 0
    %16 = vsyncpa [#allocation9], 0
    %17 = vsyncpa [#allocation12], 0
    %18 = vsyncpa [#allocation4], 0
    // Predicated region
    $region2: #{tpu_custom_call.1} parent=1 // pred_check
      _
    $region3: #{tpu_custom_call.1} parent=1 // pred_check_branch
      %20 = sbr.rel (0) target = $region5
    $region4: #{tpu_custom_call.1} parent=1 // pred_region
      %22 = vsyncadd [#allocation3], 0
      %s23 = sshll.u32 %s0, 4
      %s24 = int_to_ptr.hbm [resolvable:$true] %s23
      %s25 = sshll.u32 [#allocation2], 4
      %s26 = int_to_ptr.vmem [resolvable:$true] %s25
      %31 = dma.hbm_to_vmem [thread:$0]  %s24, 1024, %s26, [#allocation3], 64, 64, 4
    $region5: #{tpu_custom_call.1} parent=1 // pred_fallthru
      _
    // Predicated region
    $region6: #{tpu_custom_call.1} parent=1 // pred_check
      _
    $region7: #{tpu_custom_call.1} parent=1 // pred_check_branch
      %33 = sbr.rel (0) target = $region9
    $region8: #{tpu_custom_call.1} parent=1 // pred_region
      %35 = vsyncadd [#allocation6], 0
      %s37 = sshll.u32 %s1, 4
      %s38 = int_to_ptr.hbm [resolvable:$true] %s37
      %s39 = sshll.u32 [#allocation5], 4
      %s40 = int_to_ptr.vmem [resolvable:$true] %s39
      %42 = dma.hbm_to_vmem [thread:$0]  %s38, 64, %s40, [#allocation6]
    $region9: #{tpu_custom_call.1} parent=1 // pred_fallthru
      _
    // Predicated region
    $region10: #{tpu_custom_call.1} parent=1 // pred_check
      _
    $region11: #{tpu_custom_call.1} parent=1 // pred_check_branch
      %44 = sbr.rel (0) target = $region13
    $region12: #{tpu_custom_call.1} parent=1 // pred_region
      %46 = vsyncadd [#allocation6], 0
      %s47 = sshll.u32 %s2, 4
      %s48 = int_to_ptr.hbm [resolvable:$true] %s47
      %s49 = sshll.u32 [#allocation7], 4
      %s50 = int_to_ptr.vmem [resolvable:$true] %s49
      %55 = dma.hbm_to_vmem [thread:$0]  %s48, 1024, %s50, [#allocation6], 64, 64, 4
    $region13: #{tpu_custom_call.1} parent=1 // pred_fallthru
      _
    // Predicated region
    $region14: #{tpu_custom_call.1} parent=1 // pred_check
      _
    $region15: #{tpu_custom_call.1} parent=1 // pred_check_branch
      %57 = sbr.rel (0) target = $region17
    $region16: #{tpu_custom_call.1} parent=1 // pred_region
      %59 = vsyncadd [#allocation9], 0
      %s60 = sshll.u32 %s3, 4
      %s61 = int_to_ptr.hbm [resolvable:$true] %s60
      %s62 = sshll.u32 [#allocation8], 4
      %s63 = int_to_ptr.vmem [resolvable:$true] %s62
      %68 = dma.hbm_to_vmem [thread:$0]  %s61, 3072, %s63, [#allocation9], 64, 64, 4
    $region17: #{tpu_custom_call.1} parent=1 // pred_fallthru
      _
    // Predicated region
    $region18: #{tpu_custom_call.1} parent=1 // pred_check
      _
    $region19: #{tpu_custom_call.1} parent=1 // pred_check_branch
      %70 = sbr.rel (0) target = $region21
    $region20: #{tpu_custom_call.1} parent=1 // pred_region
      %72 = vsyncadd [#allocation9], 0
      %s74 = sshll.u32 %s4, 4
      %s75 = int_to_ptr.hbm [resolvable:$true] %s74
      %s76 = sshll.u32 [#allocation10], 4
      %s77 = int_to_ptr.vmem [resolvable:$true] %s76
      %79 = dma.hbm_to_vmem [thread:$0]  %s75, 64, %s77, [#allocation9]
    $region21: #{tpu_custom_call.1} parent=1 // pred_fallthru
      _
    // Predicated region
    $region22: #{tpu_custom_call.1} parent=1 // pred_check
      _
    $region23: #{tpu_custom_call.1} parent=1 // pred_check_branch
      %81 = sbr.rel (0) target = $region25
    $region24: #{tpu_custom_call.1} parent=1 // pred_region
      %83 = vsyncadd [#allocation12], 0
      %s84 = sshll.u32 %s5, 4
      %s85 = int_to_ptr.hbm [resolvable:$true] %s84
      %s86 = sshll.u32 [#allocation11], 4
      %s87 = int_to_ptr.vmem [resolvable:$true] %s86
      %92 = dma.hbm_to_vmem [thread:$0]  %s85, 1024, %s87, [#allocation12], 64, 64, 4
    $region25: #{tpu_custom_call.1} parent=1 // pred_fallthru
      _
    // Predicated region
    $region26: #{tpu_custom_call.1} parent=1 // pred_check
      _
    $region27: #{tpu_custom_call.1} parent=1 // pred_check_branch
      %94 = sbr.rel (0) target = $region29
    $region28: #{tpu_custom_call.1} parent=1 // pred_region
      _
    $region29: #{tpu_custom_call.1} parent=1 // pred_fallthru
      _
    // Predicated region
    $region30: #{tpu_custom_call.1} parent=1 // pred_check
      _
    $region31: #{tpu_custom_call.1} parent=1 // pred_check_branch
      %96 = sbr.rel (0) target = $region33
    $region32: #{tpu_custom_call.1} parent=1 // pred_region
      %98 = vsyncadd [#allocation12], 0
      %s99 = sshll.u32 %s7, 4
      %s100 = int_to_ptr.hbm [resolvable:$true] %s99
      %s101 = sshll.u32 [#allocation13], 4
      %s102 = int_to_ptr.vmem [resolvable:$true] %s101
      %107 = dma.hbm_to_vmem [thread:$0]  %s100, 1024, %s102, [#allocation12], 64, 64, 4
    $region33: #{tpu_custom_call.1} parent=1 // pred_fallthru
      _
    // Predicated region
    $region34: #{tpu_custom_call.1} parent=1 // pred_check
      _
    $region35: #{tpu_custom_call.1} parent=1 // pred_check_branch
      %109 = sbr.rel (0) target = $region37
    $region36: #{tpu_custom_call.1} parent=1 // pred_region
      _
    $region37: #{tpu_custom_call.1} parent=1 // pred_fallthru
      _
    // Predicated region
    $region38: #{tpu_custom_call.1} parent=1 // pred_check
      _
    $region39: #{tpu_custom_call.1} parent=1 // pred_check_branch
      %111 = sbr.rel (0) target = $region41
    $region40: #{tpu_custom_call.1} parent=1 // pred_region
      %113 = dma.done [#allocation3], 1024
    $region41: #{tpu_custom_call.1} parent=1 // pred_fallthru
      _
    // Predicated region
    $region42: #{tpu_custom_call.1} parent=1 // pred_check
      _
    $region43: #{tpu_custom_call.1} parent=1 // pred_check_branch
      %115 = sbr.rel (0) target = $region45
    $region44: #{tpu_custom_call.1} parent=1 // pred_region
      %117 = dma.done [#allocation6], 64
    $region45: #{tpu_custom_call.1} parent=1 // pred_fallthru
      _
    // Predicated region
    $region46: #{tpu_custom_call.1} parent=1 // pred_check
      _
    $region47: #{tpu_custom_call.1} parent=1 // pred_check_branch
      %119 = sbr.rel (0) target = $region49
    $region48: #{tpu_custom_call.1} parent=1 // pred_region
      %121 = dma.done [#allocation6], 1024
    $region49: #{tpu_custom_call.1} parent=1 // pred_fallthru
      _
    // Predicated region
    $region50: #{tpu_custom_call.1} parent=1 // pred_check
      _
    $region51: #{tpu_custom_call.1} parent=1 // pred_check_branch
      %123 = sbr.rel (0) target = $region53
    $region52: #{tpu_custom_call.1} parent=1 // pred_region
      %125 = dma.done [#allocation9], 3072
    $region53: #{tpu_custom_call.1} parent=1 // pred_fallthru
      _
    // Predicated region
    $region54: #{tpu_custom_call.1} parent=1 // pred_check
      _
    $region55: #{tpu_custom_call.1} parent=1 // pred_check_branch
      %127 = sbr.rel (0) target = $region57
    $region56: #{tpu_custom_call.1} parent=1 // pred_region
      %129 = dma.done [#allocation9], 64
    $region57: #{tpu_custom_call.1} parent=1 // pred_fallthru
      _
    // Predicated region
    $region58: #{tpu_custom_call.1} parent=1 // pred_check
      _
    $region59: #{tpu_custom_call.1} parent=1 // pred_check_branch
      %131 = sbr.rel (0) target = $region61
    $region60: #{tpu_custom_call.1} parent=1 // pred_region
      %133 = dma.done [#allocation12], 1024
    $region61: #{tpu_custom_call.1} parent=1 // pred_fallthru
      _
    // Predicated region
    $region62: #{tpu_custom_call.1} parent=1 // pred_check
      _
    $region63: #{tpu_custom_call.1} parent=1 // pred_check_branch
      %135 = sbr.rel (0) target = $region65
    $region64: #{tpu_custom_call.1} parent=1 // pred_region
      %137 = dma.done [#allocation12], 1024
    $region65: #{tpu_custom_call.1} parent=1 // pred_fallthru
      _
    %v138 = vld [vmem:[#allocation2] sm:$0xf]
    %v139 = vld [vmem:[#allocation2 + $0x4] sm:$0xf]
    %v140 = vld [vmem:[#allocation2 + $0x8] sm:$0xf]
    %v141 = vld [vmem:[#allocation2 + $0xc] sm:$0xf]
    %v142 = vld [vmem:[#allocation2 + $0x10] sm:$0xf]
    %v143 = vld [vmem:[#allocation2 + $0x14] sm:$0xf]
    %v144 = vld [vmem:[#allocation2 + $0x18] sm:$0xf]
    %v145 = vld [vmem:[#allocation2 + $0x1c] sm:$0xf]
    %v146 = vld [vmem:[#allocation2 + $0x20] sm:$0xf]
    %v147 = vld [vmem:[#allocation2 + $0x24] sm:$0xf]
    %v148 = vld [vmem:[#allocation2 + $0x28] sm:$0xf]
    %v149 = vld [vmem:[#allocation2 + $0x2c] sm:$0xf]
    %v150 = vld [vmem:[#allocation2 + $0x30] sm:$0xf]
    %v151 = vld [vmem:[#allocation2 + $0x34] sm:$0xf]
    %v152 = vld [vmem:[#allocation2 + $0x38] sm:$0xf]
    %v153 = vld [vmem:[#allocation2 + $0x3c] sm:$0xf]
    %v154 = vld [vmem:[#allocation7] sm:$0xf]
    %v155 = vld [vmem:[#allocation7 + $0x4] sm:$0xf]
    %v156 = vld [vmem:[#allocation7 + $0x8] sm:$0xf]
    %v157 = vld [vmem:[#allocation7 + $0xc] sm:$0xf]
    %v158 = vld [vmem:[#allocation7 + $0x10] sm:$0xf]
    %v159 = vld [vmem:[#allocation7 + $0x14] sm:$0xf]
    %v160 = vld [vmem:[#allocation7 + $0x18] sm:$0xf]
    %v161 = vld [vmem:[#allocation7 + $0x1c] sm:$0xf]
    %v162 = vld [vmem:[#allocation7 + $0x20] sm:$0xf]
    %v163 = vld [vmem:[#allocation7 + $0x24] sm:$0xf]
    %v164 = vld [vmem:[#allocation7 + $0x28] sm:$0xf]
    %v165 = vld [vmem:[#allocation7 + $0x2c] sm:$0xf]
    %v166 = vld [vmem:[#allocation7 + $0x30] sm:$0xf]
    %v167 = vld [vmem:[#allocation7 + $0x34] sm:$0xf]
    %v168 = vld [vmem:[#allocation7 + $0x38] sm:$0xf]
    %v169 = vld [vmem:[#allocation7 + $0x3c] sm:$0xf]
    %v170 = vld [vmem:[#allocation8] sm:$0xf]
    %v171 = vld [vmem:[#allocation8 + $0x4] sm:$0xf]
    %v172 = vld [vmem:[#allocation8 + $0x8] sm:$0xf]
    %v173 = vld [vmem:[#allocation8 + $0xc] sm:$0xf]
    %v174 = vld [vmem:[#allocation8 + $0x10] sm:$0xf]
    %v175 = vld [vmem:[#allocation8 + $0x14] sm:$0xf]
    %v176 = vld [vmem:[#allocation8 + $0x18] sm:$0xf]
    %v177 = vld [vmem:[#allocation8 + $0x1c] sm:$0xf]
    %v178 = vld [vmem:[#allocation8 + $0x20] sm:$0xf]
    %v179 = vld [vmem:[#allocation8 + $0x24] sm:$0xf]
    %v180 = vld [vmem:[#allocation8 + $0x28] sm:$0xf]
    %v181 = vld [vmem:[#allocation8 + $0x2c] sm:$0xf]
    %v182 = vld [vmem:[#allocation8 + $0x30] sm:$0xf]
    %v183 = vld [vmem:[#allocation8 + $0x34] sm:$0xf]
    %v184 = vld [vmem:[#allocation8 + $0x38] sm:$0xf]
    %v185 = vld [vmem:[#allocation8 + $0x3c] sm:$0xf]
    %v202 = vunpack.c.l.b16 %v154
    %v203 = vunpack.c.l.b16 %v155
    %v204 = vunpack.c.l.b16 %v156
    %v205 = vunpack.c.l.b16 %v157
    %v206 = vunpack.c.l.b16 %v158
    %v207 = vunpack.c.l.b16 %v159
    %v208 = vunpack.c.l.b16 %v160
    %v209 = vunpack.c.l.b16 %v161
    %v210 = vunpack.c.l.b16 %v162
    %v211 = vunpack.c.l.b16 %v163
    %v212 = vunpack.c.l.b16 %v164
    %v213 = vunpack.c.l.b16 %v165
    %v214 = vunpack.c.l.b16 %v166
    %v215 = vunpack.c.l.b16 %v167
    %v216 = vunpack.c.l.b16 %v168
    %v217 = vunpack.c.l.b16 %v169
    %v218 = vpack.c.b16 %v203, %v202
    %v219 = vpack.c.b16 %v205, %v204
    %v220 = vpack.c.b16 %v207, %v206
    %v221 = vpack.c.b16 %v209, %v208
    %v222 = vpack.c.b16 %v211, %v210
    %v223 = vpack.c.b16 %v213, %v212
    %v224 = vpack.c.b16 %v215, %v214
    %v225 = vpack.c.b16 %v217, %v216
    %v250 = vunpack.c.l.b16 %v170
    %v251 = vunpack.c.l.b16 %v171
    %v252 = vunpack.c.l.b16 %v172
    %v253 = vunpack.c.l.b16 %v173
    %v254 = vunpack.c.l.b16 %v174
    %v255 = vunpack.c.l.b16 %v175
    %v256 = vunpack.c.l.b16 %v176
    %v257 = vunpack.c.l.b16 %v177
    %v258 = vunpack.c.l.b16 %v178
    %v259 = vunpack.c.l.b16 %v179
    %v260 = vunpack.c.l.b16 %v180
    %v261 = vunpack.c.l.b16 %v181
    %v262 = vunpack.c.l.b16 %v182
    %v263 = vunpack.c.l.b16 %v183
    %v264 = vunpack.c.l.b16 %v184
    %v265 = vunpack.c.l.b16 %v185
    %v266 = vpack.c.b16 %v251, %v250
    %v267 = vpack.c.b16 %v253, %v252
    %v268 = vpack.c.b16 %v255, %v254
    %v269 = vpack.c.b16 %v257, %v256
    %v270 = vpack.c.b16 %v259, %v258
    %v271 = vpack.c.b16 %v261, %v260
    %v272 = vpack.c.b16 %v263, %v262
    %v273 = vpack.c.b16 %v265, %v264
    %282 = vmatpush.bf16.msra.mxu0 %v273
    %283 = vmatpush.bf16.msra.mxu0 %v272
    %284 = vmatpush.bf16.msra.mxu0 %v271
    %285 = vmatpush.bf16.msra.mxu0 %v270
    %286 = vmatpush.bf16.msra.mxu0 %v269
    %287 = vmatpush.bf16.msra.mxu0 %v268
    %288 = vmatpush.bf16.msra.mxu0 %v267
    %289 = vmatpush.bf16.msra.mxu0 %v266
    %290 = vmatmul.bf16.gmra.mxu0 %v218
    %v291 = vpop.f32.mrf.mxu0
    %v292 = vadd.f32 0.0, %v291
    %v293 = vpop.f32.mrf.mxu0
    %v294 = vadd.f32 0.0, %v293
    %295 = vmatmul.bf16.gmra.mxu0 %v219
    %v296 = vpop.f32.mrf.mxu0
    %v297 = vadd.f32 0.0, %v296
    %v298 = vpop.f32.mrf.mxu0
    %v299 = vadd.f32 0.0, %v298
    %300 = vmatmul.bf16.gmra.mxu0 %v220
    %v301 = vpop.f32.mrf.mxu0
    %v302 = vadd.f32 0.0, %v301
    %v303 = vpop.f32.mrf.mxu0
    %v304 = vadd.f32 0.0, %v303
    %305 = vmatmul.bf16.gmra.mxu0 %v221
    %v306 = vpop.f32.mrf.mxu0
    %v307 = vadd.f32 0.0, %v306
    %v308 = vpop.f32.mrf.mxu0
    %v309 = vadd.f32 0.0, %v308
    %310 = vmatmul.bf16.gmra.mxu0 %v222
    %v311 = vpop.f32.mrf.mxu0
    %v312 = vadd.f32 0.0, %v311
    %v313 = vpop.f32.mrf.mxu0
    %v314 = vadd.f32 0.0, %v313
    %315 = vmatmul.bf16.gmra.mxu0 %v223
    %v316 = vpop.f32.mrf.mxu0
    %v317 = vadd.f32 0.0, %v316
    %v318 = vpop.f32.mrf.mxu0
    %v319 = vadd.f32 0.0, %v318
    %320 = vmatmul.bf16.gmra.mxu0 %v224
    %v321 = vpop.f32.mrf.mxu0
    %v322 = vadd.f32 0.0, %v321
    %v323 = vpop.f32.mrf.mxu0
    %v324 = vadd.f32 0.0, %v323
    %325 = vmatmul.bf16.gmra.mxu0 %v225
    %v326 = vpop.f32.mrf.mxu0
    %v327 = vadd.f32 0.0, %v326
    %v328 = vpop.f32.mrf.mxu0
    %v329 = vadd.f32 0.0, %v328
    %330 = vdwg.mxu0
    %v331 = vpack.c.bf16 %v294, %v292
    %v332 = vpack.c.bf16 %v299, %v297
    %v333 = vpack.c.bf16 %v304, %v302
    %v334 = vpack.c.bf16 %v309, %v307
    %v335 = vpack.c.bf16 %v314, %v312
    %v336 = vpack.c.bf16 %v319, %v317
    %v337 = vpack.c.bf16 %v324, %v322
    %v338 = vpack.c.bf16 %v329, %v327
    %v339 = vld [vmem:[#allocation10] sm:$0x1]
    %v340 = vperm.slane %v339, 0
    %v357 = vunpack.c.l.b16 %v138
    %v358 = vunpack.c.l.b16 %v139
    %v359 = vunpack.c.l.b16 %v140
    %v360 = vunpack.c.l.b16 %v141
    %v361 = vunpack.c.l.b16 %v142
    %v362 = vunpack.c.l.b16 %v143
    %v363 = vunpack.c.l.b16 %v144
    %v364 = vunpack.c.l.b16 %v145
    %v365 = vunpack.c.l.b16 %v146
    %v366 = vunpack.c.l.b16 %v147
    %v367 = vunpack.c.l.b16 %v148
    %v368 = vunpack.c.l.b16 %v149
    %v369 = vunpack.c.l.b16 %v150
    %v370 = vunpack.c.l.b16 %v151
    %v371 = vunpack.c.l.b16 %v152
    %v372 = vunpack.c.l.b16 %v153
    %v373 = vpack.c.b16 %v358, %v357
    %v374 = vpack.c.b16 %v360, %v359
    %v375 = vpack.c.b16 %v362, %v361
    %v376 = vpack.c.b16 %v364, %v363
    %v377 = vpack.c.b16 %v366, %v365
    %v378 = vpack.c.b16 %v368, %v367
    %v379 = vpack.c.b16 %v370, %v369
    %v380 = vpack.c.b16 %v372, %v371
    %389 = vmatpush.bf16.msra.mxu0 %v338
    %390 = vmatpush.bf16.msra.mxu0 %v337
    %391 = vmatpush.bf16.msra.mxu0 %v336
    %392 = vmatpush.bf16.msra.mxu0 %v335
    %393 = vmatpush.bf16.msra.mxu0 %v334
    %394 = vmatpush.bf16.msra.mxu0 %v333
    %395 = vmatpush.bf16.msra.mxu0 %v332
    %396 = vmatpush.bf16.msra.mxu0 %v331
    %397 = vmatmul.bf16.gmra.mxu0 %v373
    %v398 = vpop.f32.mrf.mxu0
    %v399 = vadd.f32 %v340, %v398
    %v400 = vpop.f32.mrf.mxu0
    %v401 = vadd.f32 %v340, %v400
    %402 = vmatmul.bf16.gmra.mxu0 %v374
    %v403 = vpop.f32.mrf.mxu0
    %v404 = vadd.f32 %v340, %v403
    %v405 = vpop.f32.mrf.mxu0
    %v406 = vadd.f32 %v340, %v405
    %407 = vmatmul.bf16.gmra.mxu0 %v375
    %v408 = vpop.f32.mrf.mxu0
    %v409 = vadd.f32 %v340, %v408
    %v410 = vpop.f32.mrf.mxu0
    %v411 = vadd.f32 %v340, %v410
    %412 = vmatmul.bf16.gmra.mxu0 %v376
    %v413 = vpop.f32.mrf.mxu0
    %v414 = vadd.f32 %v340, %v413
    %v415 = vpop.f32.mrf.mxu0
    %v416 = vadd.f32 %v340, %v415
    %417 = vmatmul.bf16.gmra.mxu0 %v377
    %v418 = vpop.f32.mrf.mxu0
    %v419 = vadd.f32 %v340, %v418
    %v420 = vpop.f32.mrf.mxu0
    %v421 = vadd.f32 %v340, %v420
    %422 = vmatmul.bf16.gmra.mxu0 %v378
    %v423 = vpop.f32.mrf.mxu0
    %v424 = vadd.f32 %v340, %v423
    %v425 = vpop.f32.mrf.mxu0
    %v426 = vadd.f32 %v340, %v425
    %427 = vmatmul.bf16.gmra.mxu0 %v379
    %v428 = vpop.f32.mrf.mxu0
    %v429 = vadd.f32 %v340, %v428
    %v430 = vpop.f32.mrf.mxu0
    %v431 = vadd.f32 %v340, %v430
    %432 = vmatmul.bf16.gmra.mxu0 %v380
    %v433 = vpop.f32.mrf.mxu0
    %v434 = vadd.f32 %v340, %v433
    %v435 = vpop.f32.mrf.mxu0
    %v436 = vadd.f32 %v340, %v435
    %437 = vdwg.mxu0
    %v438 = vmax.f32 %v399, 0.0
    %v439 = vmax.f32 %v401, 0.0
    %v440 = vmax.f32 %v404, 0.0
    %v441 = vmax.f32 %v406, 0.0
    %v442 = vmax.f32 %v409, 0.0
    %v443 = vmax.f32 %v411, 0.0
    %v444 = vmax.f32 %v414, 0.0
    %v445 = vmax.f32 %v416, 0.0
    %v446 = vmax.f32 %v419, 0.0
    %v447 = vmax.f32 %v421, 0.0
    %v448 = vmax.f32 %v424, 0.0
    %v449 = vmax.f32 %v426, 0.0
    %v450 = vmax.f32 %v429, 0.0
    %v451 = vmax.f32 %v431, 0.0
    %v452 = vmax.f32 %v434, 0.0
    %v453 = vmax.f32 %v436, 0.0
    %v454 = vpack.c.bf16 %v439, %v438
    %v455 = vpack.c.bf16 %v441, %v440
    %v456 = vpack.c.bf16 %v443, %v442
    %v457 = vpack.c.bf16 %v445, %v444
    %v458 = vpack.c.bf16 %v447, %v446
    %v459 = vpack.c.bf16 %v449, %v448
    %v460 = vpack.c.bf16 %v451, %v450
    %v461 = vpack.c.bf16 %v453, %v452
    %s462 = scalar_lea.vmem [#allocation8], 64
    %v463 = vld [vmem:[%s462] sm:$0xf]
    %v464 = vld [vmem:[%s462 + $0x4] sm:$0xf]
    %v465 = vld [vmem:[%s462 + $0x8] sm:$0xf]
    %v466 = vld [vmem:[%s462 + $0xc] sm:$0xf]
    %v467 = vld [vmem:[%s462 + $0x10] sm:$0xf]
    %v468 = vld [vmem:[%s462 + $0x14] sm:$0xf]
    %v469 = vld [vmem:[%s462 + $0x18] sm:$0xf]
    %v470 = vld [vmem:[%s462 + $0x1c] sm:$0xf]
    %v471 = vld [vmem:[%s462 + $0x20] sm:$0xf]
    %v472 = vld [vmem:[%s462 + $0x24] sm:$0xf]
    %v473 = vld [vmem:[%s462 + $0x28] sm:$0xf]
    %v474 = vld [vmem:[%s462 + $0x2c] sm:$0xf]
    %v475 = vld [vmem:[%s462 + $0x30] sm:$0xf]
    %v476 = vld [vmem:[%s462 + $0x34] sm:$0xf]
    %v477 = vld [vmem:[%s462 + $0x38] sm:$0xf]
    %v478 = vld [vmem:[%s462 + $0x3c] sm:$0xf]
    %v495 = vunpack.c.l.b16 %v463
    %v496 = vunpack.c.l.b16 %v464
    %v497 = vunpack.c.l.b16 %v465
    %v498 = vunpack.c.l.b16 %v466
    %v499 = vunpack.c.l.b16 %v467
    %v500 = vunpack.c.l.b16 %v468
    %v501 = vunpack.c.l.b16 %v469
    %v502 = vunpack.c.l.b16 %v470
    %v503 = vunpack.c.l.b16 %v471
    %v504 = vunpack.c.l.b16 %v472
    %v505 = vunpack.c.l.b16 %v473
    %v506 = vunpack.c.l.b16 %v474
    %v507 = vunpack.c.l.b16 %v475
    %v508 = vunpack.c.l.b16 %v476
    %v509 = vunpack.c.l.b16 %v477
    %v510 = vunpack.c.l.b16 %v478
    %v511 = vpack.c.b16 %v496, %v495
    %v512 = vpack.c.b16 %v498, %v497
    %v513 = vpack.c.b16 %v500, %v499
    %v514 = vpack.c.b16 %v502, %v501
    %v515 = vpack.c.b16 %v504, %v503
    %v516 = vpack.c.b16 %v506, %v505
    %v517 = vpack.c.b16 %v508, %v507
    %v518 = vpack.c.b16 %v510, %v509
    %527 = vmatpush.bf16.msra.mxu0 %v518
    %528 = vmatpush.bf16.msra.mxu0 %v517
    %529 = vmatpush.bf16.msra.mxu0 %v516
    %530 = vmatpush.bf16.msra.mxu0 %v515
    %531 = vmatpush.bf16.msra.mxu0 %v514
    %532 = vmatpush.bf16.msra.mxu0 %v513
    %533 = vmatpush.bf16.msra.mxu0 %v512
    %534 = vmatpush.bf16.msra.mxu0 %v511
    %535 = vmatmul.bf16.gmra.mxu0 %v454
    %v536 = vpop.f32.mrf.mxu0
    %v537 = vadd.f32 0.0, %v536
    %v538 = vpop.f32.mrf.mxu0
    %v539 = vadd.f32 0.0, %v538
    %540 = vmatmul.bf16.gmra.mxu0 %v455
    %v541 = vpop.f32.mrf.mxu0
    %v542 = vadd.f32 0.0, %v541
    %v543 = vpop.f32.mrf.mxu0
    %v544 = vadd.f32 0.0, %v543
    %545 = vmatmul.bf16.gmra.mxu0 %v456
    %v546 = vpop.f32.mrf.mxu0
    %v547 = vadd.f32 0.0, %v546
    %v548 = vpop.f32.mrf.mxu0
    %v549 = vadd.f32 0.0, %v548
    %550 = vmatmul.bf16.gmra.mxu0 %v457
    %v551 = vpop.f32.mrf.mxu0
    %v552 = vadd.f32 0.0, %v551
    %v553 = vpop.f32.mrf.mxu0
    %v554 = vadd.f32 0.0, %v553
    %555 = vmatmul.bf16.gmra.mxu0 %v458
    %v556 = vpop.f32.mrf.mxu0
    %v557 = vadd.f32 0.0, %v556
    %v558 = vpop.f32.mrf.mxu0
    %v559 = vadd.f32 0.0, %v558
    %560 = vmatmul.bf16.gmra.mxu0 %v459
    %v561 = vpop.f32.mrf.mxu0
    %v562 = vadd.f32 0.0, %v561
    %v563 = vpop.f32.mrf.mxu0
    %v564 = vadd.f32 0.0, %v563
    %565 = vmatmul.bf16.gmra.mxu0 %v460
    %v566 = vpop.f32.mrf.mxu0
    %v567 = vadd.f32 0.0, %v566
    %v568 = vpop.f32.mrf.mxu0
    %v569 = vadd.f32 0.0, %v568
    %570 = vmatmul.bf16.gmra.mxu0 %v461
    %v571 = vpop.f32.mrf.mxu0
    %v572 = vadd.f32 0.0, %v571
    %v573 = vpop.f32.mrf.mxu0
    %v574 = vadd.f32 0.0, %v573
    %575 = vdwg.mxu0
    %v576 = vpack.c.bf16 %v539, %v537
    %v577 = vpack.c.bf16 %v544, %v542
    %v578 = vpack.c.bf16 %v549, %v547
    %v579 = vpack.c.bf16 %v554, %v552
    %v580 = vpack.c.bf16 %v559, %v557
    %v581 = vpack.c.bf16 %v564, %v562
    %v582 = vpack.c.bf16 %v569, %v567
    %v583 = vpack.c.bf16 %v574, %v572
    %v584 = vld [vmem:[#allocation10 + $0x1] sm:$0x1]
    %v585 = vperm.slane %v584, 0
    %586 = vmatpush.bf16.msra.mxu0 %v583
    %587 = vmatpush.bf16.msra.mxu0 %v582
    %588 = vmatpush.bf16.msra.mxu0 %v581
    %589 = vmatpush.bf16.msra.mxu0 %v580
    %590 = vmatpush.bf16.msra.mxu0 %v579
    %591 = vmatpush.bf16.msra.mxu0 %v578
    %592 = vmatpush.bf16.msra.mxu0 %v577
    %593 = vmatpush.bf16.msra.mxu0 %v576
    %594 = vmatmul.bf16.gmra.mxu0 %v373
    %v595 = vpop.f32.mrf.mxu0
    %v596 = vadd.f32 %v585, %v595
    %v597 = vpop.f32.mrf.mxu0
    %v598 = vadd.f32 %v585, %v597
    %599 = vmatmul.bf16.gmra.mxu0 %v374
    %v600 = vpop.f32.mrf.mxu0
    %v601 = vadd.f32 %v585, %v600
    %v602 = vpop.f32.mrf.mxu0
    %v603 = vadd.f32 %v585, %v602
    %604 = vmatmul.bf16.gmra.mxu0 %v375
    %v605 = vpop.f32.mrf.mxu0
    %v606 = vadd.f32 %v585, %v605
    %v607 = vpop.f32.mrf.mxu0
    %v608 = vadd.f32 %v585, %v607
    %609 = vmatmul.bf16.gmra.mxu0 %v376
    %v610 = vpop.f32.mrf.mxu0
    %v611 = vadd.f32 %v585, %v610
    %v612 = vpop.f32.mrf.mxu0
    %v613 = vadd.f32 %v585, %v612
    %614 = vmatmul.bf16.gmra.mxu0 %v377
    %v615 = vpop.f32.mrf.mxu0
    %v616 = vadd.f32 %v585, %v615
    %v617 = vpop.f32.mrf.mxu0
    %v618 = vadd.f32 %v585, %v617
    %619 = vmatmul.bf16.gmra.mxu0 %v378
    %v620 = vpop.f32.mrf.mxu0
    %v621 = vadd.f32 %v585, %v620
    %v622 = vpop.f32.mrf.mxu0
    %v623 = vadd.f32 %v585, %v622
    %624 = vmatmul.bf16.gmra.mxu0 %v379
    %v625 = vpop.f32.mrf.mxu0
    %v626 = vadd.f32 %v585, %v625
    %v627 = vpop.f32.mrf.mxu0
    %v628 = vadd.f32 %v585, %v627
    %629 = vmatmul.bf16.gmra.mxu0 %v380
    %v630 = vpop.f32.mrf.mxu0
    %v631 = vadd.f32 %v585, %v630
    %v632 = vpop.f32.mrf.mxu0
    %v633 = vadd.f32 %v585, %v632
    %634 = vdwg.mxu0
    %v635 = vmax.f32 %v596, 0.0
    %v636 = vmax.f32 %v598, 0.0
    %v637 = vmax.f32 %v601, 0.0
    %v638 = vmax.f32 %v603, 0.0
    %v639 = vmax.f32 %v606, 0.0
    %v640 = vmax.f32 %v608, 0.0
    %v641 = vmax.f32 %v611, 0.0
    %v642 = vmax.f32 %v613, 0.0
    %v643 = vmax.f32 %v616, 0.0
    %v644 = vmax.f32 %v618, 0.0
    %v645 = vmax.f32 %v621, 0.0
    %v646 = vmax.f32 %v623, 0.0
    %v647 = vmax.f32 %v626, 0.0
    %v648 = vmax.f32 %v628, 0.0
    %v649 = vmax.f32 %v631, 0.0
    %v650 = vmax.f32 %v633, 0.0
    %v651 = vpack.c.bf16 %v636, %v635
    %v652 = vpack.c.bf16 %v638, %v637
    %v653 = vpack.c.bf16 %v640, %v639
    %v654 = vpack.c.bf16 %v642, %v641
    %v655 = vpack.c.bf16 %v644, %v643
    %v656 = vpack.c.bf16 %v646, %v645
    %v657 = vpack.c.bf16 %v648, %v647
    %v658 = vpack.c.bf16 %v650, %v649
    %s659 = scalar_lea.vmem [#allocation8], 128
    %v660 = vld [vmem:[%s659] sm:$0xf]
    %v661 = vld [vmem:[%s659 + $0x4] sm:$0xf]
    %v662 = vld [vmem:[%s659 + $0x8] sm:$0xf]
    %v663 = vld [vmem:[%s659 + $0xc] sm:$0xf]
    %v664 = vld [vmem:[%s659 + $0x10] sm:$0xf]
    %v665 = vld [vmem:[%s659 + $0x14] sm:$0xf]
    %v666 = vld [vmem:[%s659 + $0x18] sm:$0xf]
    %v667 = vld [vmem:[%s659 + $0x1c] sm:$0xf]
    %v668 = vld [vmem:[%s659 + $0x20] sm:$0xf]
    %v669 = vld [vmem:[%s659 + $0x24] sm:$0xf]
    %v670 = vld [vmem:[%s659 + $0x28] sm:$0xf]
    %v671 = vld [vmem:[%s659 + $0x2c] sm:$0xf]
    %v672 = vld [vmem:[%s659 + $0x30] sm:$0xf]
    %v673 = vld [vmem:[%s659 + $0x34] sm:$0xf]
    %v674 = vld [vmem:[%s659 + $0x38] sm:$0xf]
    %v675 = vld [vmem:[%s659 + $0x3c] sm:$0xf]
    %v692 = vunpack.c.l.b16 %v660
    %v693 = vunpack.c.l.b16 %v661
    %v694 = vunpack.c.l.b16 %v662
    %v695 = vunpack.c.l.b16 %v663
    %v696 = vunpack.c.l.b16 %v664
    %v697 = vunpack.c.l.b16 %v665
    %v698 = vunpack.c.l.b16 %v666
    %v699 = vunpack.c.l.b16 %v667
    %v700 = vunpack.c.l.b16 %v668
    %v701 = vunpack.c.l.b16 %v669
    %v702 = vunpack.c.l.b16 %v670
    %v703 = vunpack.c.l.b16 %v671
    %v704 = vunpack.c.l.b16 %v672
    %v705 = vunpack.c.l.b16 %v673
    %v706 = vunpack.c.l.b16 %v674
    %v707 = vunpack.c.l.b16 %v675
    %v708 = vpack.c.b16 %v693, %v692
    %v709 = vpack.c.b16 %v695, %v694
    %v710 = vpack.c.b16 %v697, %v696
    %v711 = vpack.c.b16 %v699, %v698
    %v712 = vpack.c.b16 %v701, %v700
    %v713 = vpack.c.b16 %v703, %v702
    %v714 = vpack.c.b16 %v705, %v704
    %v715 = vpack.c.b16 %v707, %v706
    %724 = vmatpush.bf16.msra.mxu0 %v715
    %725 = vmatpush.bf16.msra.mxu0 %v714
    %726 = vmatpush.bf16.msra.mxu0 %v713
    %727 = vmatpush.bf16.msra.mxu0 %v712
    %728 = vmatpush.bf16.msra.mxu0 %v711
    %729 = vmatpush.bf16.msra.mxu0 %v710
    %730 = vmatpush.bf16.msra.mxu0 %v709
    %731 = vmatpush.bf16.msra.mxu0 %v708
    %732 = vmatmul.bf16.gmra.mxu0 %v651
    %v733 = vpop.f32.mrf.mxu0
    %v734 = vadd.f32 0.0, %v733
    %v735 = vpop.f32.mrf.mxu0
    %v736 = vadd.f32 0.0, %v735
    %737 = vmatmul.bf16.gmra.mxu0 %v652
    %v738 = vpop.f32.mrf.mxu0
    %v739 = vadd.f32 0.0, %v738
    %v740 = vpop.f32.mrf.mxu0
    %v741 = vadd.f32 0.0, %v740
    %742 = vmatmul.bf16.gmra.mxu0 %v653
    %v743 = vpop.f32.mrf.mxu0
    %v744 = vadd.f32 0.0, %v743
    %v745 = vpop.f32.mrf.mxu0
    %v746 = vadd.f32 0.0, %v745
    %747 = vmatmul.bf16.gmra.mxu0 %v654
    %v748 = vpop.f32.mrf.mxu0
    %v749 = vadd.f32 0.0, %v748
    %v750 = vpop.f32.mrf.mxu0
    %v751 = vadd.f32 0.0, %v750
    %752 = vmatmul.bf16.gmra.mxu0 %v655
    %v753 = vpop.f32.mrf.mxu0
    %v754 = vadd.f32 0.0, %v753
    %v755 = vpop.f32.mrf.mxu0
    %v756 = vadd.f32 0.0, %v755
    %757 = vmatmul.bf16.gmra.mxu0 %v656
    %v758 = vpop.f32.mrf.mxu0
    %v759 = vadd.f32 0.0, %v758
    %v760 = vpop.f32.mrf.mxu0
    %v761 = vadd.f32 0.0, %v760
    %762 = vmatmul.bf16.gmra.mxu0 %v657
    %v763 = vpop.f32.mrf.mxu0
    %v764 = vadd.f32 0.0, %v763
    %v765 = vpop.f32.mrf.mxu0
    %v766 = vadd.f32 0.0, %v765
    %767 = vmatmul.bf16.gmra.mxu0 %v658
    %v768 = vpop.f32.mrf.mxu0
    %v769 = vadd.f32 0.0, %v768
    %v770 = vpop.f32.mrf.mxu0
    %v771 = vadd.f32 0.0, %v770
    %772 = vdwg.mxu0
    %v773 = vpack.c.bf16 %v736, %v734
    %v774 = vpack.c.bf16 %v741, %v739
    %v775 = vpack.c.bf16 %v746, %v744
    %v776 = vpack.c.bf16 %v751, %v749
    %v777 = vpack.c.bf16 %v756, %v754
    %v778 = vpack.c.bf16 %v761, %v759
    %v779 = vpack.c.bf16 %v766, %v764
    %v780 = vpack.c.bf16 %v771, %v769
    %v781 = vld [vmem:[#allocation10 + $0x2] sm:$0x1]
    %v782 = vperm.slane %v781, 0
    %783 = vmatpush.bf16.msra.mxu0 %v780
    %784 = vmatpush.bf16.msra.mxu0 %v779
    %785 = vmatpush.bf16.msra.mxu0 %v778
    %786 = vmatpush.bf16.msra.mxu0 %v777
    %787 = vmatpush.bf16.msra.mxu0 %v776
    %788 = vmatpush.bf16.msra.mxu0 %v775
    %789 = vmatpush.bf16.msra.mxu0 %v774
    %790 = vmatpush.bf16.msra.mxu0 %v773
    %791 = vmatmul.bf16.gmra.mxu0 %v373
    %v792 = vpop.f32.mrf.mxu0
    %v793 = vadd.f32 %v782, %v792
    %v794 = vpop.f32.mrf.mxu0
    %v795 = vadd.f32 %v782, %v794
    %796 = vmatmul.bf16.gmra.mxu0 %v374
    %v797 = vpop.f32.mrf.mxu0
    %v798 = vadd.f32 %v782, %v797
    %v799 = vpop.f32.mrf.mxu0
    %v800 = vadd.f32 %v782, %v799
    %801 = vmatmul.bf16.gmra.mxu0 %v375
    %v802 = vpop.f32.mrf.mxu0
    %v803 = vadd.f32 %v782, %v802
    %v804 = vpop.f32.mrf.mxu0
    %v805 = vadd.f32 %v782, %v804
    %806 = vmatmul.bf16.gmra.mxu0 %v376
    %v807 = vpop.f32.mrf.mxu0
    %v808 = vadd.f32 %v782, %v807
    %v809 = vpop.f32.mrf.mxu0
    %v810 = vadd.f32 %v782, %v809
    %811 = vmatmul.bf16.gmra.mxu0 %v377
    %v812 = vpop.f32.mrf.mxu0
    %v813 = vadd.f32 %v782, %v812
    %v814 = vpop.f32.mrf.mxu0
    %v815 = vadd.f32 %v782, %v814
    %816 = vmatmul.bf16.gmra.mxu0 %v378
    %v817 = vpop.f32.mrf.mxu0
    %v818 = vadd.f32 %v782, %v817
    %v819 = vpop.f32.mrf.mxu0
    %v820 = vadd.f32 %v782, %v819
    %821 = vmatmul.bf16.gmra.mxu0 %v379
    %v822 = vpop.f32.mrf.mxu0
    %v823 = vadd.f32 %v782, %v822
    %v824 = vpop.f32.mrf.mxu0
    %v825 = vadd.f32 %v782, %v824
    %826 = vmatmul.bf16.gmra.mxu0 %v380
    %v827 = vpop.f32.mrf.mxu0
    %v828 = vadd.f32 %v782, %v827
    %v829 = vpop.f32.mrf.mxu0
    %v830 = vadd.f32 %v782, %v829
    %831 = vdwg.mxu0
    %v832 = vmax.f32 %v793, 0.0
    %v833 = vmax.f32 %v795, 0.0
    %v834 = vmax.f32 %v798, 0.0
    %v835 = vmax.f32 %v800, 0.0
    %v836 = vmax.f32 %v803, 0.0
    %v837 = vmax.f32 %v805, 0.0
    %v838 = vmax.f32 %v808, 0.0
    %v839 = vmax.f32 %v810, 0.0
    %v840 = vmax.f32 %v813, 0.0
    %v841 = vmax.f32 %v815, 0.0
    %v842 = vmax.f32 %v818, 0.0
    %v843 = vmax.f32 %v820, 0.0
    %v844 = vmax.f32 %v823, 0.0
    %v845 = vmax.f32 %v825, 0.0
    %v846 = vmax.f32 %v828, 0.0
    %v847 = vmax.f32 %v830, 0.0
    %v848 = vpack.c.bf16 %v833, %v832
    %v849 = vpack.c.bf16 %v835, %v834
    %v850 = vpack.c.bf16 %v837, %v836
    %v851 = vpack.c.bf16 %v839, %v838
    %v852 = vpack.c.bf16 %v841, %v840
    %v853 = vpack.c.bf16 %v843, %v842
    %v854 = vpack.c.bf16 %v845, %v844
    %v855 = vpack.c.bf16 %v847, %v846
    %v856 = vld [vmem:[#allocation5] sm:$0xf]
    %857 = vmatpush.bf16.msra.mxu0 %v855
    %858 = vmatpush.bf16.msra.mxu0 %v854
    %859 = vmatpush.bf16.msra.mxu0 %v853
    %860 = vmatpush.bf16.msra.mxu0 %v852
    %861 = vmatpush.bf16.msra.mxu0 %v851
    %862 = vmatpush.bf16.msra.mxu0 %v850
    %863 = vmatpush.bf16.msra.mxu0 %v849
    %864 = vmatpush.bf16.msra.mxu0 %v848
    %865 = vmatmul.bf16.gmra.mxu0 %v856
    %v866 = vpop.f32.mrf.mxu0
    %v867 = vadd.f32 0.0, %v866
    %v868 = vpop.f32.mrf.mxu0
    %869 = vdwg.mxu0
    %v870 = vpack.c.bf16 %v867, %v867
    %v871 = vld [vmem:[#allocation11] sm:$0xf]
    %v872 = vld [vmem:[#allocation11 + $0x4] sm:$0xf]
    %v873 = vld [vmem:[#allocation11 + $0x8] sm:$0xf]
    %v874 = vld [vmem:[#allocation11 + $0xc] sm:$0xf]
    %v875 = vld [vmem:[#allocation11 + $0x10] sm:$0xf]
    %v876 = vld [vmem:[#allocation11 + $0x14] sm:$0xf]
    %v877 = vld [vmem:[#allocation11 + $0x18] sm:$0xf]
    %v878 = vld [vmem:[#allocation11 + $0x1c] sm:$0xf]
    %v879 = vld [vmem:[#allocation11 + $0x20] sm:$0xf]
    %v880 = vld [vmem:[#allocation11 + $0x24] sm:$0xf]
    %v881 = vld [vmem:[#allocation11 + $0x28] sm:$0xf]
    %v882 = vld [vmem:[#allocation11 + $0x2c] sm:$0xf]
    %v883 = vld [vmem:[#allocation11 + $0x30] sm:$0xf]
    %v884 = vld [vmem:[#allocation11 + $0x34] sm:$0xf]
    %v885 = vld [vmem:[#allocation11 + $0x38] sm:$0xf]
    %v886 = vld [vmem:[#allocation11 + $0x3c] sm:$0xf]
    %v887 = vld [vmem:[%s6] sm:$0x1]
    %v889 = vperm.slane %v887, 0
    %v907 = vunpack.c.l.b16 %v871
    %v908 = vunpack.c.l.b16 %v872
    %v909 = vunpack.c.l.b16 %v873
    %v910 = vunpack.c.l.b16 %v874
    %v911 = vunpack.c.l.b16 %v875
    %v912 = vunpack.c.l.b16 %v876
    %v913 = vunpack.c.l.b16 %v877
    %v914 = vunpack.c.l.b16 %v878
    %v915 = vunpack.c.l.b16 %v879
    %v916 = vunpack.c.l.b16 %v880
    %v917 = vunpack.c.l.b16 %v881
    %v918 = vunpack.c.l.b16 %v882
    %v919 = vunpack.c.l.b16 %v883
    %v920 = vunpack.c.l.b16 %v884
    %v921 = vunpack.c.l.b16 %v885
    %v922 = vunpack.c.l.b16 %v886
    %v923 = vpack.c.b16 %v908, %v907
    %v924 = vpack.c.b16 %v910, %v909
    %v925 = vpack.c.b16 %v912, %v911
    %v926 = vpack.c.b16 %v914, %v913
    %v927 = vpack.c.b16 %v916, %v915
    %v928 = vpack.c.b16 %v918, %v917
    %v929 = vpack.c.b16 %v920, %v919
    %v930 = vpack.c.b16 %v922, %v921
    %939 = vmatpush.bf16.msra.mxu0 %v930
    %940 = vmatpush.bf16.msra.mxu0 %v929
    %941 = vmatpush.bf16.msra.mxu0 %v928
    %942 = vmatpush.bf16.msra.mxu0 %v927
    %943 = vmatpush.bf16.msra.mxu0 %v926
    %944 = vmatpush.bf16.msra.mxu0 %v925
    %945 = vmatpush.bf16.msra.mxu0 %v924
    %946 = vmatpush.bf16.msra.mxu0 %v923
    %947 = vmatmul.bf16.gmra.mxu0 %v870
    %v948 = vpop.f32.mrf.mxu0
    %v949 = vadd.f32 %v889, %v948
    %v950 = vpop.f32.mrf.mxu0
    %951 = vdwg.mxu0
    %v952 = vmax.f32 %v949, 0.0
    %v953 = vpack.c.bf16 %v952, %v952
    %v954 = vld [vmem:[#allocation13] sm:$0xf]
    %v955 = vld [vmem:[#allocation13 + $0x4] sm:$0xf]
    %v956 = vld [vmem:[#allocation13 + $0x8] sm:$0xf]
    %v957 = vld [vmem:[#allocation13 + $0xc] sm:$0xf]
    %v958 = vld [vmem:[#allocation13 + $0x10] sm:$0xf]
    %v959 = vld [vmem:[#allocation13 + $0x14] sm:$0xf]
    %v960 = vld [vmem:[#allocation13 + $0x18] sm:$0xf]
    %v961 = vld [vmem:[#allocation13 + $0x1c] sm:$0xf]
    %v962 = vld [vmem:[#allocation13 + $0x20] sm:$0xf]
    %v963 = vld [vmem:[#allocation13 + $0x24] sm:$0xf]
    %v964 = vld [vmem:[#allocation13 + $0x28] sm:$0xf]
    %v965 = vld [vmem:[#allocation13 + $0x2c] sm:$0xf]
    %v966 = vld [vmem:[#allocation13 + $0x30] sm:$0xf]
    %v967 = vld [vmem:[#allocation13 + $0x34] sm:$0xf]
    %v968 = vld [vmem:[#allocation13 + $0x38] sm:$0xf]
    %v969 = vld [vmem:[#allocation13 + $0x3c] sm:$0xf]
    %v970 = vld [vmem:[%s8] sm:$0x1]
    %v972 = vperm.slane %v970, 0
    %v990 = vunpack.c.l.b16 %v954
    %v991 = vunpack.c.l.b16 %v955
    %v992 = vunpack.c.l.b16 %v956
    %v993 = vunpack.c.l.b16 %v957
    %v994 = vunpack.c.l.b16 %v958
    %v995 = vunpack.c.l.b16 %v959
    %v996 = vunpack.c.l.b16 %v960
    %v997 = vunpack.c.l.b16 %v961
    %v998 = vunpack.c.l.b16 %v962
    %v999 = vunpack.c.l.b16 %v963
    %v1000 = vunpack.c.l.b16 %v964
    %v1001 = vunpack.c.l.b16 %v965
    %v1002 = vunpack.c.l.b16 %v966
    %v1003 = vunpack.c.l.b16 %v967
    %v1004 = vunpack.c.l.b16 %v968
    %v1005 = vunpack.c.l.b16 %v969
    %v1006 = vpack.c.b16 %v991, %v990
    %v1007 = vpack.c.b16 %v993, %v992
    %v1008 = vpack.c.b16 %v995, %v994
    %v1009 = vpack.c.b16 %v997, %v996
    %v1010 = vpack.c.b16 %v999, %v998
    %v1011 = vpack.c.b16 %v1001, %v1000
    %v1012 = vpack.c.b16 %v1003, %v1002
    %v1013 = vpack.c.b16 %v1005, %v1004
    %1022 = vmatpush.bf16.msra.mxu0 %v1013
    %1023 = vmatpush.bf16.msra.mxu0 %v1012
    %1024 = vmatpush.bf16.msra.mxu0 %v1011
    %1025 = vmatpush.bf16.msra.mxu0 %v1010
    %1026 = vmatpush.bf16.msra.mxu0 %v1009
    %1027 = vmatpush.bf16.msra.mxu0 %v1008
    %1028 = vmatpush.bf16.msra.mxu0 %v1007
    %1029 = vmatpush.bf16.msra.mxu0 %v1006
    %1030 = vmatmul.bf16.gmra.mxu0 %v953
    %v1031 = vpop.f32.mrf.mxu0
    %v1032 = vadd.f32 %v972, %v1031
    %v1033 = vpop.f32.mrf.mxu0
    %1034 = vdwg.mxu0
    %1035 = vst [vmem:[#allocation14] sm:$0xff] %v1032
    // Predicated region
    $region66: #{tpu_custom_call.1} parent=1 // pred_check
      _
    $region67: #{tpu_custom_call.1} parent=1 // pred_check_branch
      %1037 = sbr.rel (0) target = $region69
    $region68: #{tpu_custom_call.1} parent=1 // pred_region
      %1039 = vsyncadd [#allocation4], 0
      %s1041 = sshll.u32 [#allocation14], 4
      %s1042 = int_to_ptr.vmem [resolvable:$true] %s1041
      %s1043 = sshll.u32 %s9, 4
      %s1044 = int_to_ptr.hbm [resolvable:$true] %s1043
      %1046 = dma.vmem_to_hbm [thread:$0]  %s1042, 128, %s1044, [#allocation4]
    $region69: #{tpu_custom_call.1} parent=1 // pred_fallthru
      _
    // Predicated region
    $region70: #{tpu_custom_call.1} parent=1 // pred_check
      _
    $region71: #{tpu_custom_call.1} parent=1 // pred_check_branch
      %1048 = sbr.rel (0) target = $region73
    $region72: #{tpu_custom_call.1} parent=1 // pred_region
      %1050 = dma.done [#allocation4], 128
    $region73: #{tpu_custom_call.1} parent=1 // pred_fallthru
      _
    %1051 = vsyncpa [#allocation3], 1
    %1052 = vsyncpa [#allocation6], 1
    %1053 = vsyncpa [#allocation9], 1
    %1054 = vsyncpa [#allocation12], 1
    %1055 = vsyncpa [#allocation4], 1

</llo_original>
